<compile_context>
chip_gen: v7x
topology: tpu7x:2x2x1
jax: 0.10.0
libtpu: 0.0.40
codegen_flags: <defaults>
</compile_context>

<pallas_src>
import functools

import jax
import jax.numpy as jnp
from jax.experimental import pallas as pl
from jax.experimental.pallas import tpu as pltpu


def _round_up(x, m):
    return ((x + m - 1) // m) * m


def make_mlp_kernel(n_layers, padded_out_dims):
    """Fused MLP kernel.

    Ref order: (x, W1, ..., WL, b_packed, out)
      x        : (TB, K0_pad)            f32
      Wi       : (Ki_pad, Ni_pad)        bf16   (constant index map)
      b_packed : (L, Nmax_pad)           f32    (constant index map)
      out      : (TB, NL_pad)            f32
    """

    def kernel(x_ref, *refs):
        w_refs = refs[:n_layers]
        b_ref = refs[n_layers]
        o_ref = refs[n_layers + 1]

        h = x_ref[...].astype(jnp.float32)
        for i in range(n_layers):
            w = w_refs[i][...]                              # bf16 (K_pad, N_pad)
            n_pad = padded_out_dims[i]
            b = b_ref[i:i + 1, :n_pad]                      # f32  (1, N_pad)
            # bf16 inputs on the MXU, f32 accumulate.
            acc = jnp.dot(h.astype(jnp.bfloat16), w,
                          preferred_element_type=jnp.float32)
            h = acc + b                                     # bias-add in f32
            if i < n_layers - 1:                            # relu on all but last
                h = jnp.maximum(h, 0.0)                     # f32 VPU (v5e-safe)
        o_ref[...] = h.astype(o_ref.dtype)

    return kernel


@functools.partial(jax.jit, static_argnames=("tb",))
def network_same_forward(x, params, *, tb=8):
    """params: list of (W, b) with W shape (in, out), b shape (1, out)."""
    n_layers = len(params)
    in_dims = [w.shape[0] for w, _ in params]
    out_dims = [w.shape[1] for w, _ in params]
    pad_in = [_round_up(d, 128) for d in in_dims]
    pad_out = [_round_up(d, 128) for d in out_dims]
    n_max = max(pad_out)

    batch = x.shape[0]
    b_pad = _round_up(batch, tb)

    # Zero-pad x to (b_pad, K0_pad): padded input columns hit zero weight rows,
    # so they do not change the result.
    x_p = jnp.pad(x, ((0, b_pad - batch), (0, pad_in[0] - in_dims[0])))

    # Zero-pad weights (bf16) and pack all biases into one lane-dense slab.
    w_padded = []
    b_packed = jnp.zeros((n_layers, n_max), jnp.float32)
    for i, (w, b) in enumerate(params):
        wp = jnp.pad(w, ((0, pad_in[i] - in_dims[i]),
                         (0, pad_out[i] - out_dims[i])))
        w_padded.append(wp.astype(jnp.bfloat16))
        b_packed = b_packed.at[i, :out_dims[i]].set(jnp.ravel(b))

    kernel = make_mlp_kernel(n_layers, pad_out)

    in_specs = [pl.BlockSpec((tb, pad_in[0]), lambda i: (i, 0))]      # x: tiled over batch
    for li in range(n_layers):                                        # weights: VMEM-resident
        in_specs.append(
            pl.BlockSpec((pad_in[li], pad_out[li]), lambda i: (0, 0)))
    in_specs.append(pl.BlockSpec((n_layers, n_max), lambda i: (0, 0)))  # packed biases

    out_specs = pl.BlockSpec((tb, pad_out[-1]), lambda i: (i, 0))
    out_shape = jax.ShapeDtypeStruct((b_pad, pad_out[-1]), x.dtype)

    out = pl.pallas_call(
        kernel,
        grid=(b_pad // tb,),
        in_specs=in_specs,
        out_specs=out_specs,
        out_shape=out_shape,
        compiler_params=pltpu.CompilerParams(
            dimension_semantics=("parallel",),        # shards batch across v7x's 2 TCs
            vmem_limit_bytes=64 * 1024 * 1024,
        ),
    )(x_p, *w_padded, b_packed)

    # Strip padding (kernel stored a lane-dense padded slab).
    return out[:batch, :out_dims[-1]]


def init_params(layers, key):
    """Deterministic init matching nn.Linear's U(-1/sqrt(in), 1/sqrt(in))."""
    params = []
    for in_dim, out_dim in zip(layers, layers[1:]):
        key, kw, kb = jax.random.split(key, 3)
        bound = 1.0 / (in_dim ** 0.5)
        # PyTorch stores weight as (out, in); we pre-transpose to (in, out).
        w = jax.random.uniform(kw, (in_dim, out_dim), jnp.float32, -bound, bound)
        b = jax.random.uniform(kb, (1, out_dim), jnp.float32, -bound, bound)
        params.append((w, b))
    return params


def reference_forward(x, params, *, bf16_matmul=False):
    h = x
    for i, (w, b) in enumerate(params):
        if bf16_matmul:
            h = jnp.dot(h.astype(jnp.bfloat16), w.astype(jnp.bfloat16),
                        preferred_element_type=jnp.float32) + b
        else:
            h = h @ w + b
        if i < len(params) - 1:
            h = jnp.maximum(h, 0.0)
    return h


if __name__ == "__main__":
    # Layers = [16, 32, 32, 8]  (3 Linear layers; relu after the first two)
    layers = [16, 32, 32, 8]
    batch = 8

    key = jax.random.PRNGKey(0)
    key, kx = jax.random.split(key)
    x = jax.random.normal(kx, (batch, layers[0]), jnp.float32)
    params = init_params(layers, key)

    out = network_same_forward(x, params)
    out = jax.block_until_ready(out)

    ref_bf16 = reference_forward(x, params, bf16_matmul=True)  # same math as kernel
    ref_f32 = reference_forward(x, params)                     # full-precision ref

    assert out.shape == (batch, layers[-1])
    assert jnp.allclose(out, ref_bf16, atol=1e-2, rtol=1e-2)
    assert jnp.allclose(out, ref_f32, atol=5e-2, rtol=5e-2)

    print("KERNEL_OK")
</pallas_src>

<mosaic_0001>
module attributes {stable_mosaic.version = 11 : i64} {
  func.func @kernel(%arg0: i32, %arg1: memref<8x128xf32, #tpu.memory_space<vmem>>, %arg2: memref<128x128xbf16, #tpu.memory_space<vmem>>, %arg3: memref<128x128xbf16, #tpu.memory_space<vmem>>, %arg4: memref<128x128xbf16, #tpu.memory_space<vmem>>, %arg5: memref<3x128xf32, #tpu.memory_space<vmem>>, %arg6: memref<8x128xf32, #tpu.memory_space<vmem>>) attributes {dimension_semantics = [#tpu.dimension_semantics<parallel>], iteration_bounds = array<i64: 1>, scalar_prefetch = 0 : i64, scratch_operands = 0 : i64, tpu.core_type = #tpu.core_type<tc>, window_params = [{transform_indices = @transform_0, window_bounds = array<i64: 8, 128>}, {pipeline_mode = #tpu.pipeline_mode<synchronous>, transform_indices = @transform_1, window_bounds = array<i64: 128, 128>}, {pipeline_mode = #tpu.pipeline_mode<synchronous>, transform_indices = @transform_2, window_bounds = array<i64: 128, 128>}, {pipeline_mode = #tpu.pipeline_mode<synchronous>, transform_indices = @transform_3, window_bounds = array<i64: 128, 128>}, {pipeline_mode = #tpu.pipeline_mode<synchronous>, transform_indices = @transform_4, window_bounds = array<i64: 3, 128>}, {transform_indices = @transform_5, window_bounds = array<i64: 8, 128>}]} {
    %c0 = arith.constant 0 : index
    %c0_0 = arith.constant 0 : index
    %0 = vector.load %arg1[%c0, %c0_0] : memref<8x128xf32, #tpu.memory_space<vmem>>, vector<8x128xf32>
    %c0_1 = arith.constant 0 : index
    %c0_2 = arith.constant 0 : index
    %1 = vector.load %arg2[%c0_1, %c0_2] : memref<128x128xbf16, #tpu.memory_space<vmem>>, vector<128x128xbf16>
    %c0_3 = arith.constant 0 : index
    %c0_4 = arith.constant 0 : index
    %2 = vector.load %arg5[%c0_3, %c0_4] : memref<3x128xf32, #tpu.memory_space<vmem>>, vector<1x128xf32>
    %3 = arith.truncf %0 : vector<8x128xf32> to vector<8x128xbf16>
    %cst = arith.constant dense<0.000000e+00> : vector<8x128xf32>
    %4 = tpu.matmul %3, %1, %cst {dimension_numbers = #tpu.dot_dimension_numbers<[1], [0], [0], [1], [0, 0, 1, 1], [], []>} : vector<8x128xbf16>, vector<128x128xbf16>, vector<8x128xf32> -> vector<8x128xf32>
    %5 = vector.broadcast %2 : vector<1x128xf32> to vector<8x128xf32>
    %6 = arith.addf %4, %5 : vector<8x128xf32>
    %cst_5 = arith.constant 0.000000e+00 : f32
    %7 = vector.broadcast %cst_5 : f32 to vector<8x128xf32>
    %8 = arith.maximumf %6, %7 : vector<8x128xf32>
    %c0_6 = arith.constant 0 : index
    %c0_7 = arith.constant 0 : index
    %9 = vector.load %arg3[%c0_6, %c0_7] : memref<128x128xbf16, #tpu.memory_space<vmem>>, vector<128x128xbf16>
    %c1 = arith.constant 1 : index
    %c0_8 = arith.constant 0 : index
    %10 = vector.load %arg5[%c1, %c0_8] : memref<3x128xf32, #tpu.memory_space<vmem>>, vector<1x128xf32>
    %11 = arith.truncf %8 : vector<8x128xf32> to vector<8x128xbf16>
    %cst_9 = arith.constant dense<0.000000e+00> : vector<8x128xf32>
    %12 = tpu.matmul %11, %9, %cst_9 {dimension_numbers = #tpu.dot_dimension_numbers<[1], [0], [0], [1], [0, 0, 1, 1], [], []>} : vector<8x128xbf16>, vector<128x128xbf16>, vector<8x128xf32> -> vector<8x128xf32>
    %13 = vector.broadcast %10 : vector<1x128xf32> to vector<8x128xf32>
    %14 = arith.addf %12, %13 : vector<8x128xf32>
    %cst_10 = arith.constant 0.000000e+00 : f32
    %15 = vector.broadcast %cst_10 : f32 to vector<8x128xf32>
    %16 = arith.maximumf %14, %15 : vector<8x128xf32>
    %c0_11 = arith.constant 0 : index
    %c0_12 = arith.constant 0 : index
    %17 = vector.load %arg4[%c0_11, %c0_12] : memref<128x128xbf16, #tpu.memory_space<vmem>>, vector<128x128xbf16>
    %c2 = arith.constant 2 : index
    %c0_13 = arith.constant 0 : index
    %18 = vector.load %arg5[%c2, %c0_13] : memref<3x128xf32, #tpu.memory_space<vmem>>, vector<1x128xf32>
    %19 = arith.truncf %16 : vector<8x128xf32> to vector<8x128xbf16>
    %cst_14 = arith.constant dense<0.000000e+00> : vector<8x128xf32>
    %20 = tpu.matmul %19, %17, %cst_14 {dimension_numbers = #tpu.dot_dimension_numbers<[1], [0], [0], [1], [0, 0, 1, 1], [], []>} : vector<8x128xbf16>, vector<128x128xbf16>, vector<8x128xf32> -> vector<8x128xf32>
    %21 = vector.broadcast %18 : vector<1x128xf32> to vector<8x128xf32>
    %22 = arith.addf %20, %21 : vector<8x128xf32>
    %c0_15 = arith.constant 0 : index
    %c0_16 = arith.constant 0 : index
    %23 = vector.load %arg6[%c0_15, %c0_16] : memref<8x128xf32, #tpu.memory_space<vmem>>, vector<8x128xf32>
    tpu.vector_store %arg6[%c0_15, %c0_16], %22 {strides = array<i32>} : memref<8x128xf32, #tpu.memory_space<vmem>>, vector<8x128xf32>,
    return
  }
  func.func @transform_0(%arg0: i32) -> (i32, i32) {
    %c0_i32 = arith.constant 0 : i32
    %c0_i32_0 = arith.constant 0 : i32
    return %arg0, %c0_i32 : i32, i32
  }
  func.func @transform_1(%arg0: i32) -> (i32, i32) {
    %c0_i32 = arith.constant 0 : i32
    %c0_i32_0 = arith.constant 0 : i32
    %c0_i32_1 = arith.constant 0 : i32
    return %c0_i32, %c0_i32_0 : i32, i32
  }
  func.func @transform_2(%arg0: i32) -> (i32, i32) {
    %c0_i32 = arith.constant 0 : i32
    %c0_i32_0 = arith.constant 0 : i32
    %c0_i32_1 = arith.constant 0 : i32
    return %c0_i32, %c0_i32_0 : i32, i32
  }
  func.func @transform_3(%arg0: i32) -> (i32, i32) {
    %c0_i32 = arith.constant 0 : i32
    %c0_i32_0 = arith.constant 0 : i32
    %c0_i32_1 = arith.constant 0 : i32
    return %c0_i32, %c0_i32_0 : i32, i32
  }
  func.func @transform_4(%arg0: i32) -> (i32, i32) {
    %c0_i32 = arith.constant 0 : i32
    %c0_i32_0 = arith.constant 0 : i32
    %c0_i32_1 = arith.constant 0 : i32
    return %c0_i32, %c0_i32_0 : i32, i32
  }
  func.func @transform_5(%arg0: i32) -> (i32, i32) {
    %c0_i32 = arith.constant 0 : i32
    %c0_i32_0 = arith.constant 0 : i32
    return %arg0, %c0_i32 : i32, i32
  }
}

</mosaic_0001>

<llo_original>
// kernel: network_same_forward.1
$region0: #{network_same_forward.1}
  #allocation0 [shape = 'u32[]', space=smem, size = 0x4, offset = 0x4, fixed_abs, tag = 'smem constant byte address 0x4 - core index']
  #allocation1 [shape = 'u32[144,128]{1,0:T(1,128)}', space=vmem, size = 0x12000, scoped, tag = 'internal scratch']
  %s0 = inlined_call_operand.hbm [shape: f32[8,128], index: 0, kind: input, shape index: {}]
  %s1 = inlined_call_operand.hbm [shape: bf16[128,128], index: 1, kind: input, shape index: {}]
  %s2 = inlined_call_operand.hbm [shape: bf16[128,128], index: 2, kind: input, shape index: {}]
  %s3 = inlined_call_operand.hbm [shape: bf16[128,128], index: 3, kind: input, shape index: {}]
  %s4 = inlined_call_operand.hbm [shape: f32[3,128], index: 4, kind: input, shape index: {}]
  %s5 = inlined_call_operand.hbm [shape: f32[8,128], index: 5, kind: output, shape index: {}]
  %s6 = sld [smem:[#allocation0]]
  $region50: #{network_same_forward.1} parent=0
    _
  %s8 = ssub.s32 1, %s6
  %s9 = scalar_select 0, %s8, %s6
  $region1: #{network_same_forward.1} parent=0
    #allocation2 [shape = 'u8[4096]{0}', space=vmem, size = 0x1000, scoped, tag = 'input window, operand 0, single buffered']
    #allocation3 [shape = 's32[1]{0}', space=sflag, size = 0x4, scoped, tag = 'scoped memory for network_same_forward.1']
    #allocation4 [shape = 's32[1]{0}', space=sflag, size = 0x4, scoped, tag = 'scoped memory for network_same_forward.1']
    #allocation5 [shape = 'u8[32768]{0}', space=vmem, size = 0x8000, scoped, tag = 'input window, operand 1, single buffered']
    #allocation6 [shape = 's32[1]{0}', space=sflag, size = 0x4, scoped, tag = 'scoped memory for network_same_forward.1']
    #allocation7 [shape = 'u8[32768]{0}', space=vmem, size = 0x8000, scoped, tag = 'input window, operand 2, single buffered']
    #allocation8 [shape = 'u8[32768]{0}', space=vmem, size = 0x8000, scoped, tag = 'input window, operand 3, single buffered']
    #allocation9 [shape = 's32[1]{0}', space=sflag, size = 0x4, scoped, tag = 'scoped memory for network_same_forward.1']
    #allocation10 [shape = 'u8[2048]{0}', space=vmem, size = 0x800, scoped, tag = 'input window, operand 4, single buffered']
    #allocation11 [shape = 'u8[4096]{0}', space=vmem, size = 0x1000, scoped, tag = 'output window, operand 0, single buffered']
    %10 = vsyncpa [#allocation3], 0
    %11 = vsyncpa [#allocation6], 0
    %12 = vsyncpa [#allocation9], 0
    %13 = vsyncpa [#allocation4], 0
    // Predicated region
    $region2: #{network_same_forward.1} parent=1 // pred_check
      _
    $region3: #{network_same_forward.1} parent=1 // pred_check_branch
      %15 = sbr.rel (0) target = $region5
    $region4: #{network_same_forward.1} parent=1 // pred_region
      %s17 = ssub.s32 128, 128
      %18 = vsyncadd [#allocation3], %s17
      %s20 = sshll.u32 [#allocation2], 4
      %s21 = int_to_ptr.vmem [resolvable:$true] %s20
      %23 = dma.hbm_to_vmem [thread:$0]  %s0, 128, %s21, [#allocation3]
    $region5: #{network_same_forward.1} parent=1 // pred_fallthru
      _
    // Predicated region
    $region6: #{network_same_forward.1} parent=1 // pred_check
      _
    $region7: #{network_same_forward.1} parent=1 // pred_check_branch
      %25 = sbr.rel (0) target = $region9
    $region8: #{network_same_forward.1} parent=1 // pred_region
      %s27 = ssub.s32 1024, 1024
      %28 = vsyncadd [#allocation6], %s27
      %s29 = sshll.u32 [#allocation5], 4
      %s30 = int_to_ptr.vmem [resolvable:$true] %s29
      %35 = dma.hbm_to_vmem [thread:$0]  %s1, 1024, %s30, [#allocation6], 64, 64, 4
    $region9: #{network_same_forward.1} parent=1 // pred_fallthru
      _
    // Predicated region
    $region10: #{network_same_forward.1} parent=1 // pred_check
      _
    $region11: #{network_same_forward.1} parent=1 // pred_check_branch
      %37 = sbr.rel (0) target = $region13
    $region12: #{network_same_forward.1} parent=1 // pred_region
      %s39 = ssub.s32 1024, 1024
      %40 = vsyncadd [#allocation6], %s39
      %s41 = sshll.u32 [#allocation7], 4
      %s42 = int_to_ptr.vmem [resolvable:$true] %s41
      %47 = dma.hbm_to_vmem [thread:$0]  %s2, 1024, %s42, [#allocation6], 64, 64, 4
    $region13: #{network_same_forward.1} parent=1 // pred_fallthru
      _
    // Predicated region
    $region14: #{network_same_forward.1} parent=1 // pred_check
      _
    $region15: #{network_same_forward.1} parent=1 // pred_check_branch
      %49 = sbr.rel (0) target = $region17
    $region16: #{network_same_forward.1} parent=1 // pred_region
      %s51 = ssub.s32 1024, 1024
      %52 = vsyncadd [#allocation9], %s51
      %s53 = sshll.u32 [#allocation8], 4
      %s54 = int_to_ptr.vmem [resolvable:$true] %s53
      %59 = dma.hbm_to_vmem [thread:$0]  %s3, 1024, %s54, [#allocation9], 64, 64, 4
    $region17: #{network_same_forward.1} parent=1 // pred_fallthru
      _
    // Predicated region
    $region18: #{network_same_forward.1} parent=1 // pred_check
      _
    $region19: #{network_same_forward.1} parent=1 // pred_check_branch
      %61 = sbr.rel (0) target = $region21
    $region20: #{network_same_forward.1} parent=1 // pred_region
      %s63 = ssub.s32 64, 64
      %64 = vsyncadd [#allocation9], %s63
      %s66 = sshll.u32 [#allocation10], 4
      %s67 = int_to_ptr.vmem [resolvable:$true] %s66
      %69 = dma.hbm_to_vmem [thread:$0]  %s4, 64, %s67, [#allocation9]
    $region21: #{network_same_forward.1} parent=1 // pred_fallthru
      _
    // Predicated region
    $region22: #{network_same_forward.1} parent=1 // pred_check
      _
    $region23: #{network_same_forward.1} parent=1 // pred_check_branch
      %71 = sbr.rel (0) target = $region25
    $region24: #{network_same_forward.1} parent=1 // pred_region
      %72 = dma.done [#allocation3], 128
    $region25: #{network_same_forward.1} parent=1 // pred_fallthru
      _
    // Predicated region
    $region26: #{network_same_forward.1} parent=1 // pred_check
      _
    $region27: #{network_same_forward.1} parent=1 // pred_check_branch
      %74 = sbr.rel (0) target = $region29
    $region28: #{network_same_forward.1} parent=1 // pred_region
      %75 = dma.done [#allocation6], 1024
    $region29: #{network_same_forward.1} parent=1 // pred_fallthru
      _
    // Predicated region
    $region30: #{network_same_forward.1} parent=1 // pred_check
      _
    $region31: #{network_same_forward.1} parent=1 // pred_check_branch
      %77 = sbr.rel (0) target = $region33
    $region32: #{network_same_forward.1} parent=1 // pred_region
      %78 = dma.done [#allocation6], 1024
    $region33: #{network_same_forward.1} parent=1 // pred_fallthru
      _
    // Predicated region
    $region34: #{network_same_forward.1} parent=1 // pred_check
      _
    $region35: #{network_same_forward.1} parent=1 // pred_check_branch
      %80 = sbr.rel (0) target = $region37
    $region36: #{network_same_forward.1} parent=1 // pred_region
      %81 = dma.done [#allocation9], 1024
    $region37: #{network_same_forward.1} parent=1 // pred_fallthru
      _
    // Predicated region
    $region38: #{network_same_forward.1} parent=1 // pred_check
      _
    $region39: #{network_same_forward.1} parent=1 // pred_check_branch
      %83 = sbr.rel (0) target = $region41
    $region40: #{network_same_forward.1} parent=1 // pred_region
      %84 = dma.done [#allocation9], 64
    $region41: #{network_same_forward.1} parent=1 // pred_fallthru
      _
    %v86 = vld [vmem:[#allocation2] sm:$0xff]
    %v87 = vld [vmem:[#allocation5] sm:$0xf]
    %v88 = vld [vmem:[#allocation5 + $0x4] sm:$0xf]
    %v89 = vld [vmem:[#allocation5 + $0x8] sm:$0xf]
    %v90 = vld [vmem:[#allocation5 + $0xc] sm:$0xf]
    %v91 = vld [vmem:[#allocation5 + $0x10] sm:$0xf]
    %v92 = vld [vmem:[#allocation5 + $0x14] sm:$0xf]
    %v93 = vld [vmem:[#allocation5 + $0x18] sm:$0xf]
    %v94 = vld [vmem:[#allocation5 + $0x1c] sm:$0xf]
    %v95 = vld [vmem:[#allocation5 + $0x20] sm:$0xf]
    %v96 = vld [vmem:[#allocation5 + $0x24] sm:$0xf]
    %v97 = vld [vmem:[#allocation5 + $0x28] sm:$0xf]
    %v98 = vld [vmem:[#allocation5 + $0x2c] sm:$0xf]
    %v99 = vld [vmem:[#allocation5 + $0x30] sm:$0xf]
    %v100 = vld [vmem:[#allocation5 + $0x34] sm:$0xf]
    %v101 = vld [vmem:[#allocation5 + $0x38] sm:$0xf]
    %v102 = vld [vmem:[#allocation5 + $0x3c] sm:$0xf]
    %v103 = vld [vmem:[#allocation10] sm:$0x1]
    %v104 = vpack.c.bf16 %v86, %v86
    %v105 = vlaneseq
    %v106 = vshrl.u32 %v105, 7
    %v107 = vsub.s32 0, %v106
    %v108 = vrot.slane %v103, %v107
    %v125 = vunpack.c.l.b16 %v87
    %v126 = vunpack.c.l.b16 %v88
    %v127 = vunpack.c.l.b16 %v89
    %v128 = vunpack.c.l.b16 %v90
    %v129 = vunpack.c.l.b16 %v91
    %v130 = vunpack.c.l.b16 %v92
    %v131 = vunpack.c.l.b16 %v93
    %v132 = vunpack.c.l.b16 %v94
    %v133 = vunpack.c.l.b16 %v95
    %v134 = vunpack.c.l.b16 %v96
    %v135 = vunpack.c.l.b16 %v97
    %v136 = vunpack.c.l.b16 %v98
    %v137 = vunpack.c.l.b16 %v99
    %v138 = vunpack.c.l.b16 %v100
    %v139 = vunpack.c.l.b16 %v101
    %v140 = vunpack.c.l.b16 %v102
    %v141 = vpack.c.b16 %v126, %v125
    %v142 = vpack.c.b16 %v128, %v127
    %v143 = vpack.c.b16 %v130, %v129
    %v144 = vpack.c.b16 %v132, %v131
    %v145 = vpack.c.b16 %v134, %v133
    %v146 = vpack.c.b16 %v136, %v135
    %v147 = vpack.c.b16 %v138, %v137
    %v148 = vpack.c.b16 %v140, %v139
    %157 = vmatprep.subr.bf16.mxu0 0
    %158 = vmatpush1.bf16.msra.mxu0 %v141
    %159 = vmatprep.subr.bf16.mxu0 0
    %160 = vmatpush1.bf16.msra.mxu0 %v142
    %161 = vmatprep.subr.bf16.mxu0 0
    %162 = vmatpush1.bf16.msra.mxu0 %v143
    %163 = vmatprep.subr.bf16.mxu0 0
    %164 = vmatpush1.bf16.msra.mxu0 %v144
    %165 = vmatprep.subr.bf16.mxu0 0
    %166 = vmatpush1.bf16.msra.mxu0 %v145
    %167 = vmatprep.subr.bf16.mxu0 0
    %168 = vmatpush1.bf16.msra.mxu0 %v146
    %169 = vmatprep.subr.bf16.mxu0 0
    %170 = vmatpush1.bf16.msra.mxu0 %v147
    %171 = vmatprep.subr.bf16.mxu0 0
    %172 = vmatpush1.bf16.msra.mxu0 %v148
    %173 = vmatprep.subr.bf16.mxu0 0
    %174 = vmatpush1.bf16.msra.mxu0 0
    %175 = vmatprep.subr.bf16.mxu0 0
    %176 = vmatpush1.bf16.msra.mxu0 0
    %177 = vmatprep.subr.bf16.mxu0 0
    %178 = vmatpush1.bf16.msra.mxu0 0
    %179 = vmatprep.subr.bf16.mxu0 0
    %180 = vmatpush1.bf16.msra.mxu0 0
    %181 = vmatprep.subr.bf16.mxu0 0
    %182 = vmatpush1.bf16.msra.mxu0 0
    %183 = vmatprep.subr.bf16.mxu0 0
    %184 = vmatpush1.bf16.msra.mxu0 0
    %185 = vmatprep.subr.bf16.mxu0 0
    %186 = vmatpush1.bf16.msra.mxu0 0
    %187 = vmatprep.subr.bf16.mxu0 0
    %188 = vmatpush1.bf16.msra.mxu0 0
    %189 = vmatprep.mubr.bf16.mxu0 0
    %190 = vmatmul.mubr.bf16.gmra.mrb[0].mxu0 %v104
    %v191 = vpop.f32.mrb[0].mxu0
    %v192 = vadd.f32 %v108, %v191
    %v193 = vpop.f32.mrb[0].mxu0
    %v194 = vpop.f32.mrb[0].mxu0
    %v195 = vpop.f32.mrb[0].mxu0
    %196 = vdwg.mxu0
    %v197 = vmax.f32 %v192, 0.0
    %v198 = vld [vmem:[#allocation7] sm:$0xf]
    %v199 = vld [vmem:[#allocation7 + $0x4] sm:$0xf]
    %v200 = vld [vmem:[#allocation7 + $0x8] sm:$0xf]
    %v201 = vld [vmem:[#allocation7 + $0xc] sm:$0xf]
    %v202 = vld [vmem:[#allocation7 + $0x10] sm:$0xf]
    %v203 = vld [vmem:[#allocation7 + $0x14] sm:$0xf]
    %v204 = vld [vmem:[#allocation7 + $0x18] sm:$0xf]
    %v205 = vld [vmem:[#allocation7 + $0x1c] sm:$0xf]
    %v206 = vld [vmem:[#allocation7 + $0x20] sm:$0xf]
    %v207 = vld [vmem:[#allocation7 + $0x24] sm:$0xf]
    %v208 = vld [vmem:[#allocation7 + $0x28] sm:$0xf]
    %v209 = vld [vmem:[#allocation7 + $0x2c] sm:$0xf]
    %v210 = vld [vmem:[#allocation7 + $0x30] sm:$0xf]
    %v211 = vld [vmem:[#allocation7 + $0x34] sm:$0xf]
    %v212 = vld [vmem:[#allocation7 + $0x38] sm:$0xf]
    %v213 = vld [vmem:[#allocation7 + $0x3c] sm:$0xf]
    %v214 = vld [vmem:[#allocation10 + $0x1] sm:$0x1]
    %v215 = vpack.c.bf16 %v197, %v197
    %v216 = vlaneseq
    %v217 = vshrl.u32 %v216, 7
    %v218 = vsub.s32 0, %v217
    %v219 = vrot.slane %v214, %v218
    %v236 = vunpack.c.l.b16 %v198
    %v237 = vunpack.c.l.b16 %v199
    %v238 = vunpack.c.l.b16 %v200
    %v239 = vunpack.c.l.b16 %v201
    %v240 = vunpack.c.l.b16 %v202
    %v241 = vunpack.c.l.b16 %v203
    %v242 = vunpack.c.l.b16 %v204
    %v243 = vunpack.c.l.b16 %v205
    %v244 = vunpack.c.l.b16 %v206
    %v245 = vunpack.c.l.b16 %v207
    %v246 = vunpack.c.l.b16 %v208
    %v247 = vunpack.c.l.b16 %v209
    %v248 = vunpack.c.l.b16 %v210
    %v249 = vunpack.c.l.b16 %v211
    %v250 = vunpack.c.l.b16 %v212
    %v251 = vunpack.c.l.b16 %v213
    %v252 = vpack.c.b16 %v237, %v236
    %v253 = vpack.c.b16 %v239, %v238
    %v254 = vpack.c.b16 %v241, %v240
    %v255 = vpack.c.b16 %v243, %v242
    %v256 = vpack.c.b16 %v245, %v244
    %v257 = vpack.c.b16 %v247, %v246
    %v258 = vpack.c.b16 %v249, %v248
    %v259 = vpack.c.b16 %v251, %v250
    %268 = vmatprep.subr.bf16.mxu0 0
    %269 = vmatpush1.bf16.msra.mxu0 %v252
    %270 = vmatprep.subr.bf16.mxu0 0
    %271 = vmatpush1.bf16.msra.mxu0 %v253
    %272 = vmatprep.subr.bf16.mxu0 0
    %273 = vmatpush1.bf16.msra.mxu0 %v254
    %274 = vmatprep.subr.bf16.mxu0 0
    %275 = vmatpush1.bf16.msra.mxu0 %v255
    %276 = vmatprep.subr.bf16.mxu0 0
    %277 = vmatpush1.bf16.msra.mxu0 %v256
    %278 = vmatprep.subr.bf16.mxu0 0
    %279 = vmatpush1.bf16.msra.mxu0 %v257
    %280 = vmatprep.subr.bf16.mxu0 0
    %281 = vmatpush1.bf16.msra.mxu0 %v258
    %282 = vmatprep.subr.bf16.mxu0 0
    %283 = vmatpush1.bf16.msra.mxu0 %v259
    %284 = vmatprep.subr.bf16.mxu0 0
    %285 = vmatpush1.bf16.msra.mxu0 0
    %286 = vmatprep.subr.bf16.mxu0 0
    %287 = vmatpush1.bf16.msra.mxu0 0
    %288 = vmatprep.subr.bf16.mxu0 0
    %289 = vmatpush1.bf16.msra.mxu0 0
    %290 = vmatprep.subr.bf16.mxu0 0
    %291 = vmatpush1.bf16.msra.mxu0 0
    %292 = vmatprep.subr.bf16.mxu0 0
    %293 = vmatpush1.bf16.msra.mxu0 0
    %294 = vmatprep.subr.bf16.mxu0 0
    %295 = vmatpush1.bf16.msra.mxu0 0
    %296 = vmatprep.subr.bf16.mxu0 0
    %297 = vmatpush1.bf16.msra.mxu0 0
    %298 = vmatprep.subr.bf16.mxu0 0
    %299 = vmatpush1.bf16.msra.mxu0 0
    %300 = vmatprep.mubr.bf16.mxu0 0
    %301 = vmatmul.mubr.bf16.gmra.mrb[0].mxu0 %v215
    %v302 = vpop.f32.mrb[0].mxu0
    %v303 = vadd.f32 %v219, %v302
    %v304 = vpop.f32.mrb[0].mxu0
    %v305 = vpop.f32.mrb[0].mxu0
    %v306 = vpop.f32.mrb[0].mxu0
    %307 = vdwg.mxu0
    %v308 = vmax.f32 %v303, 0.0
    %v309 = vld [vmem:[#allocation8] sm:$0xf]
    %v310 = vld [vmem:[#allocation8 + $0x4] sm:$0xf]
    %v311 = vld [vmem:[#allocation8 + $0x8] sm:$0xf]
    %v312 = vld [vmem:[#allocation8 + $0xc] sm:$0xf]
    %v313 = vld [vmem:[#allocation8 + $0x10] sm:$0xf]
    %v314 = vld [vmem:[#allocation8 + $0x14] sm:$0xf]
    %v315 = vld [vmem:[#allocation8 + $0x18] sm:$0xf]
    %v316 = vld [vmem:[#allocation8 + $0x1c] sm:$0xf]
    %v317 = vld [vmem:[#allocation8 + $0x20] sm:$0xf]
    %v318 = vld [vmem:[#allocation8 + $0x24] sm:$0xf]
    %v319 = vld [vmem:[#allocation8 + $0x28] sm:$0xf]
    %v320 = vld [vmem:[#allocation8 + $0x2c] sm:$0xf]
    %v321 = vld [vmem:[#allocation8 + $0x30] sm:$0xf]
    %v322 = vld [vmem:[#allocation8 + $0x34] sm:$0xf]
    %v323 = vld [vmem:[#allocation8 + $0x38] sm:$0xf]
    %v324 = vld [vmem:[#allocation8 + $0x3c] sm:$0xf]
    %v325 = vld [vmem:[#allocation10 + $0x2] sm:$0x1]
    %v326 = vpack.c.bf16 %v308, %v308
    %v327 = vlaneseq
    %v328 = vshrl.u32 %v327, 7
    %v329 = vsub.s32 0, %v328
    %v330 = vrot.slane %v325, %v329
    %v347 = vunpack.c.l.b16 %v309
    %v348 = vunpack.c.l.b16 %v310
    %v349 = vunpack.c.l.b16 %v311
    %v350 = vunpack.c.l.b16 %v312
    %v351 = vunpack.c.l.b16 %v313
    %v352 = vunpack.c.l.b16 %v314
    %v353 = vunpack.c.l.b16 %v315
    %v354 = vunpack.c.l.b16 %v316
    %v355 = vunpack.c.l.b16 %v317
    %v356 = vunpack.c.l.b16 %v318
    %v357 = vunpack.c.l.b16 %v319
    %v358 = vunpack.c.l.b16 %v320
    %v359 = vunpack.c.l.b16 %v321
    %v360 = vunpack.c.l.b16 %v322
    %v361 = vunpack.c.l.b16 %v323
    %v362 = vunpack.c.l.b16 %v324
    %v363 = vpack.c.b16 %v348, %v347
    %v364 = vpack.c.b16 %v350, %v349
    %v365 = vpack.c.b16 %v352, %v351
    %v366 = vpack.c.b16 %v354, %v353
    %v367 = vpack.c.b16 %v356, %v355
    %v368 = vpack.c.b16 %v358, %v357
    %v369 = vpack.c.b16 %v360, %v359
    %v370 = vpack.c.b16 %v362, %v361
    %379 = vmatprep.subr.bf16.mxu0 0
    %380 = vmatpush1.bf16.msra.mxu0 %v363
    %381 = vmatprep.subr.bf16.mxu0 0
    %382 = vmatpush1.bf16.msra.mxu0 %v364
    %383 = vmatprep.subr.bf16.mxu0 0
    %384 = vmatpush1.bf16.msra.mxu0 %v365
    %385 = vmatprep.subr.bf16.mxu0 0
    %386 = vmatpush1.bf16.msra.mxu0 %v366
    %387 = vmatprep.subr.bf16.mxu0 0
    %388 = vmatpush1.bf16.msra.mxu0 %v367
    %389 = vmatprep.subr.bf16.mxu0 0
    %390 = vmatpush1.bf16.msra.mxu0 %v368
    %391 = vmatprep.subr.bf16.mxu0 0
    %392 = vmatpush1.bf16.msra.mxu0 %v369
    %393 = vmatprep.subr.bf16.mxu0 0
    %394 = vmatpush1.bf16.msra.mxu0 %v370
    %395 = vmatprep.subr.bf16.mxu0 0
    %396 = vmatpush1.bf16.msra.mxu0 0
    %397 = vmatprep.subr.bf16.mxu0 0
    %398 = vmatpush1.bf16.msra.mxu0 0
    %399 = vmatprep.subr.bf16.mxu0 0
    %400 = vmatpush1.bf16.msra.mxu0 0
    %401 = vmatprep.subr.bf16.mxu0 0
    %402 = vmatpush1.bf16.msra.mxu0 0
    %403 = vmatprep.subr.bf16.mxu0 0
    %404 = vmatpush1.bf16.msra.mxu0 0
    %405 = vmatprep.subr.bf16.mxu0 0
    %406 = vmatpush1.bf16.msra.mxu0 0
    %407 = vmatprep.subr.bf16.mxu0 0
    %408 = vmatpush1.bf16.msra.mxu0 0
    %409 = vmatprep.subr.bf16.mxu0 0
    %410 = vmatpush1.bf16.msra.mxu0 0
    %411 = vmatprep.mubr.bf16.mxu0 0
    %412 = vmatmul.mubr.bf16.gmra.mrb[0].mxu0 %v326
    %v413 = vpop.f32.mrb[0].mxu0
    %v414 = vadd.f32 %v330, %v413
    %v415 = vpop.f32.mrb[0].mxu0
    %v416 = vpop.f32.mrb[0].mxu0
    %v417 = vpop.f32.mrb[0].mxu0
    %418 = vdwg.mxu0
    %419 = vst [vmem:[#allocation11] sm:$0xff] %v414
    // Predicated region
    $region42: #{network_same_forward.1} parent=1 // pred_check
      _
    $region43: #{network_same_forward.1} parent=1 // pred_check_branch
      %421 = sbr.rel (0) target = $region45
    $region44: #{network_same_forward.1} parent=1 // pred_region
      %s423 = ssub.s32 128, 128
      %424 = vsyncadd [#allocation4], %s423
      %s426 = sshll.u32 [#allocation11], 4
      %s427 = int_to_ptr.vmem [resolvable:$true] %s426
      %429 = dma.vmem_to_hbm [thread:$0]  %s427, 128, %s5, [#allocation4]
    $region45: #{network_same_forward.1} parent=1 // pred_fallthru
      _
    // Predicated region
    $region46: #{network_same_forward.1} parent=1 // pred_check
      _
    $region47: #{network_same_forward.1} parent=1 // pred_check_branch
      %431 = sbr.rel (0) target = $region49
    $region48: #{network_same_forward.1} parent=1 // pred_region
      %432 = dma.done [#allocation4], 128
    $region49: #{network_same_forward.1} parent=1 // pred_fallthru
      _
    %433 = vsyncpa [#allocation3], 1
    %434 = vsyncpa [#allocation6], 1
    %435 = vsyncpa [#allocation9], 1
    %436 = vsyncpa [#allocation4], 1

</llo_original>
